<compile_context>
chip_gen: v7x
topology: tpu7x:2x2x1
jax: 0.10.0
libtpu: 0.0.40
codegen_flags: <defaults>
</compile_context>

<pallas_src>
import functools
import math

import jax
import jax.numpy as jnp
from jax import lax
from jax.experimental import pallas as pl
from jax.experimental.pallas import tpu as pltpu


def _self_attn_kernel(x_ref, wqkvT_ref, woT_ref, bqkv_ref, bo_ref, o_ref,
                      *, num_heads):
    x = x_ref[0]                                     # (S, H) f32
    H = x.shape[-1]
    d_k = H // num_heads
    x_bf = x.astype(jnp.bfloat16)

    # Fused QKV projection: one (S,H) @ (H,3H) matmul, bf16 operands,
    # f32 accumulation, single fused bias add.
    qkv = jnp.dot(x_bf, wqkvT_ref[...],
                  preferred_element_type=jnp.float32) + bqkv_ref[...]

    # Fold the 1/sqrt(d_k) score scaling into q before the bf16 cast.
    scale = 1.0 / math.sqrt(d_k)
    q_bf = (qkv[:, 0 * H:1 * H] * scale).astype(jnp.bfloat16)
    k_bf = qkv[:, 1 * H:2 * H].astype(jnp.bfloat16)
    v_bf = qkv[:, 2 * H:3 * H].astype(jnp.bfloat16)

    # Per-head attention, statically unrolled (num_heads is small).
    # Per-head contexts stay in registers (no VMEM scratch).
    ctx_parts = []
    for h in range(num_heads):
        lo = h * d_k
        qh = q_bf[:, lo:lo + d_k]                    # (S, d_k)
        kh = k_bf[:, lo:lo + d_k]
        vh = v_bf[:, lo:lo + d_k]

        # q @ k^T without materializing k^T: contract the last dims directly.
        s = lax.dot_general(qh, kh, (((1,), (1,)), ((), ())),
                            preferred_element_type=jnp.float32)   # (S, S)

        # Numerically stable softmax along the last axis (exact divide).
        s = s - jnp.max(s, axis=-1, keepdims=True)
        p = jnp.exp(s)
        p = p / jnp.sum(p, axis=-1, keepdims=True)

        ctx_parts.append(jnp.dot(p.astype(jnp.bfloat16), vh,
                                 preferred_element_type=jnp.float32))

    # Register-held head concat -> single full-width output projection
    # (K = H) + bias + residual, stored once to the output block.
    ctx_bf = jnp.concatenate(ctx_parts, axis=-1).astype(jnp.bfloat16)  # (S, H)
    out = jnp.dot(ctx_bf, woT_ref[...],
                  preferred_element_type=jnp.float32) + bo_ref[...]
    o_ref[0] = (x + out).astype(o_ref.dtype)


def self_attention(x, params, *, num_heads, mask=None, bias=None):
    """x: [B, S, H] f32.  params: wq,wk,wv,wo (H,H) and bq,bk,bv,bo (H,)."""
    assert mask is None and bias is None, (
        "mask / attn_bias_type paths are not implemented in the Pallas kernel")
    B, S, H = x.shape
    assert H % num_heads == 0

    bf16 = jnp.bfloat16
    # torch Linear computes y = x @ W^T + b, so pass W^T as (H_in, H_out).
    # Fuse Q/K/V weights into one (H, 3H) operand and biases into (1, 3H).
    wqkvT = jnp.concatenate(
        [params["wq"].T, params["wk"].T, params["wv"].T], axis=1).astype(bf16)
    woT = params["wo"].T.astype(bf16)
    bqkv = jnp.concatenate(
        [params["bq"], params["bk"], params["bv"]]).reshape(1, 3 * H)
    bo2 = params["bo"].reshape(1, H)

    # Constant index_maps: weights / biases fetched once, stay VMEM-resident.
    grid_spec = pltpu.PrefetchScalarGridSpec(
        num_scalar_prefetch=0,
        grid=(B,),
        in_specs=[
            pl.BlockSpec((1, S, H), lambda b: (b, 0, 0)),     # x
            pl.BlockSpec((H, 3 * H), lambda b: (0, 0)),       # Wqkv^T
            pl.BlockSpec((H, H), lambda b: (0, 0)),           # Wo^T
            pl.BlockSpec((1, 3 * H), lambda b: (0, 0)),       # bqkv
            pl.BlockSpec((1, H), lambda b: (0, 0)),           # bo
        ],
        out_specs=pl.BlockSpec((1, S, H), lambda b: (b, 0, 0)),
    )

    kernel = functools.partial(_self_attn_kernel, num_heads=num_heads)

    return pl.pallas_call(
        kernel,
        out_shape=jax.ShapeDtypeStruct((B, S, H), x.dtype),
        grid_spec=grid_spec,
        compiler_params=pltpu.CompilerParams(
            dimension_semantics=("parallel",)),
    )(x, wqkvT, woT, bqkv, bo2)


def self_attention_ref(x, params, *, num_heads):
    """Pure-JAX f32 reference (mirrors the PyTorch module in eval mode)."""
    B, S, H = x.shape
    d_k = H // num_heads

    def lin(a, w, b):
        return a @ w.T + b

    q = lin(x, params["wq"], params["bq"]).reshape(B, S, num_heads, d_k).transpose(0, 2, 1, 3)
    k = lin(x, params["wk"], params["bk"]).reshape(B, S, num_heads, d_k).transpose(0, 2, 1, 3)
    v = lin(x, params["wv"], params["bv"]).reshape(B, S, num_heads, d_k).transpose(0, 2, 1, 3)

    scores = jnp.einsum("bhqd,bhkd->bhqk", q, k) / math.sqrt(d_k)
    p = jax.nn.softmax(scores, axis=-1)
    ctx = jnp.einsum("bhqk,bhkd->bhqd", p, v)
    ctx = ctx.transpose(0, 2, 1, 3).reshape(B, S, H)
    out = lin(ctx, params["wo"], params["bo"])
    return x + out


if __name__ == "__main__":
    B, S, H = 2, 16, 32
    NUM_HEADS = 4

    key = jax.random.PRNGKey(0)
    keys = jax.random.split(key, 9)
    scale = 1.0 / math.sqrt(H)
    params = {
        "wq": jax.random.uniform(keys[0], (H, H), jnp.float32, -scale, scale),
        "wk": jax.random.uniform(keys[1], (H, H), jnp.float32, -scale, scale),
        "wv": jax.random.uniform(keys[2], (H, H), jnp.float32, -scale, scale),
        "wo": jax.random.uniform(keys[3], (H, H), jnp.float32, -scale, scale),
        "bq": jax.random.uniform(keys[4], (H,), jnp.float32, -scale, scale),
        "bk": jax.random.uniform(keys[5], (H,), jnp.float32, -scale, scale),
        "bv": jax.random.uniform(keys[6], (H,), jnp.float32, -scale, scale),
        "bo": jax.random.uniform(keys[7], (H,), jnp.float32, -scale, scale),
    }
    x = jax.random.normal(keys[8], (B, S, H), jnp.float32)

    out = self_attention(x, params, num_heads=NUM_HEADS)
    out = jax.block_until_ready(out)

    ref = self_attention_ref(x, params, num_heads=NUM_HEADS)
    assert out.shape == (B, S, H)
    # Tolerance loosened vs. pure-f32 only because MXU operands are bf16
    # (f32 accumulation); the softmax divide is exact.
    assert jnp.allclose(out, ref, atol=2e-2, rtol=2e-2), "mismatch vs reference"

    print("KERNEL_OK")
</pallas_src>

<mosaic_0001>
module attributes {stable_mosaic.version = 11 : i64} {
  func.func @_self_attn_kernel(%arg0: i32, %arg1: memref<1x16x32xf32, #tpu.memory_space<vmem>>, %arg2: memref<32x96xbf16, #tpu.memory_space<vmem>>, %arg3: memref<32x32xbf16, #tpu.memory_space<vmem>>, %arg4: memref<1x96xf32, #tpu.memory_space<vmem>>, %arg5: memref<1x32xf32, #tpu.memory_space<vmem>>, %arg6: memref<1x16x32xf32, #tpu.memory_space<vmem>>) attributes {dimension_semantics = [#tpu.dimension_semantics<parallel>], iteration_bounds = array<i64: 2>, scalar_prefetch = 0 : i64, scratch_operands = 0 : i64, tpu.core_type = #tpu.core_type<tc>, window_params = [{transform_indices = @transform_0, window_bounds = array<i64: 1, 16, 32>}, {pipeline_mode = #tpu.pipeline_mode<synchronous>, transform_indices = @transform_1, window_bounds = array<i64: 32, 96>}, {pipeline_mode = #tpu.pipeline_mode<synchronous>, transform_indices = @transform_2, window_bounds = array<i64: 32, 32>}, {pipeline_mode = #tpu.pipeline_mode<synchronous>, transform_indices = @transform_3, window_bounds = array<i64: 1, 96>}, {pipeline_mode = #tpu.pipeline_mode<synchronous>, transform_indices = @transform_4, window_bounds = array<i64: 1, 32>}, {transform_indices = @transform_5, window_bounds = array<i64: 1, 16, 32>}]} {
    %c0 = arith.constant 0 : index
    %c0_0 = arith.constant 0 : index
    %c0_1 = arith.constant 0 : index
    %0 = vector.load %arg1[%c0, %c0_0, %c0_1] : memref<1x16x32xf32, #tpu.memory_space<vmem>>, vector<1x16x32xf32>
    %1 = vector.shape_cast %0 : vector<1x16x32xf32> to vector<16x32xf32>
    %2 = arith.truncf %1 : vector<16x32xf32> to vector<16x32xbf16>
    %c0_2 = arith.constant 0 : index
    %c0_3 = arith.constant 0 : index
    %3 = vector.load %arg2[%c0_2, %c0_3] : memref<32x96xbf16, #tpu.memory_space<vmem>>, vector<32x96xbf16>
    %cst = arith.constant dense<0.000000e+00> : vector<16x96xf32>
    %4 = tpu.matmul %2, %3, %cst {dimension_numbers = #tpu.dot_dimension_numbers<[1], [0], [0], [1], [0, 0, 1, 1], [], []>} : vector<16x32xbf16>, vector<32x96xbf16>, vector<16x96xf32> -> vector<16x96xf32>
    %c0_4 = arith.constant 0 : index
    %c0_5 = arith.constant 0 : index
    %5 = vector.load %arg4[%c0_4, %c0_5] : memref<1x96xf32, #tpu.memory_space<vmem>>, vector<1x96xf32>
    %6 = vector.broadcast %5 : vector<1x96xf32> to vector<16x96xf32>
    %7 = arith.addf %4, %6 : vector<16x96xf32>
    %8 = vector.extract_strided_slice %7 {offsets = [0, 0], sizes = [16, 32], strides = [1, 1]} : vector<16x96xf32> to vector<16x32xf32>
    %cst_6 = arith.constant 0.353553385 : f32
    %9 = vector.broadcast %cst_6 : f32 to vector<16x32xf32>
    %10 = arith.mulf %8, %9 : vector<16x32xf32>
    %11 = arith.truncf %10 : vector<16x32xf32> to vector<16x32xbf16>
    %12 = vector.extract_strided_slice %7 {offsets = [0, 32], sizes = [16, 32], strides = [1, 1]} : vector<16x96xf32> to vector<16x32xf32>
    %13 = arith.truncf %12 : vector<16x32xf32> to vector<16x32xbf16>
    %14 = vector.extract_strided_slice %7 {offsets = [0, 64], sizes = [16, 32], strides = [1, 1]} : vector<16x96xf32> to vector<16x32xf32>
    %15 = arith.truncf %14 : vector<16x32xf32> to vector<16x32xbf16>
    %16 = vector.extract_strided_slice %11 {offsets = [0, 0], sizes = [16, 8], strides = [1, 1]} : vector<16x32xbf16> to vector<16x8xbf16>
    %17 = vector.extract_strided_slice %13 {offsets = [0, 0], sizes = [16, 8], strides = [1, 1]} : vector<16x32xbf16> to vector<16x8xbf16>
    %18 = vector.extract_strided_slice %15 {offsets = [0, 0], sizes = [16, 8], strides = [1, 1]} : vector<16x32xbf16> to vector<16x8xbf16>
    %cst_7 = arith.constant dense<0.000000e+00> : vector<16x16xf32>
    %19 = tpu.matmul %16, %17, %cst_7 {dimension_numbers = #tpu.dot_dimension_numbers<[1], [1], [0], [0], [0, 0, 1, 0], [], []>} : vector<16x8xbf16>, vector<16x8xbf16>, vector<16x16xf32> -> vector<16x16xf32>
    %cst_8 = arith.constant dense<0xFF800000> : vector<16xf32>
    %20 = vector.multi_reduction <maximumf>, %19, %cst_8 [1] : vector<16x16xf32> to vector<16xf32>
    %21 = vector.shape_cast %20 : vector<16xf32> to vector<16x1xf32>
    %22 = vector.broadcast %21 : vector<16x1xf32> to vector<16x16xf32>
    %23 = arith.subf %19, %22 : vector<16x16xf32>
    %24 = math.exp %23 : vector<16x16xf32>
    %cst_9 = arith.constant dense<0.000000e+00> : vector<16xf32>
    %25 = vector.multi_reduction <add>, %24, %cst_9 [1] : vector<16x16xf32> to vector<16xf32>
    %26 = vector.shape_cast %25 : vector<16xf32> to vector<16x1xf32>
    %27 = vector.broadcast %26 : vector<16x1xf32> to vector<16x16xf32>
    %28 = arith.divf %24, %27 : vector<16x16xf32>
    %29 = arith.truncf %28 : vector<16x16xf32> to vector<16x16xbf16>
    %cst_10 = arith.constant dense<0.000000e+00> : vector<16x8xf32>
    %30 = tpu.matmul %29, %18, %cst_10 {dimension_numbers = #tpu.dot_dimension_numbers<[1], [0], [0], [1], [0, 0, 1, 1], [], []>} : vector<16x16xbf16>, vector<16x8xbf16>, vector<16x8xf32> -> vector<16x8xf32>
    %31 = vector.extract_strided_slice %11 {offsets = [0, 8], sizes = [16, 8], strides = [1, 1]} : vector<16x32xbf16> to vector<16x8xbf16>
    %32 = vector.extract_strided_slice %13 {offsets = [0, 8], sizes = [16, 8], strides = [1, 1]} : vector<16x32xbf16> to vector<16x8xbf16>
    %33 = vector.extract_strided_slice %15 {offsets = [0, 8], sizes = [16, 8], strides = [1, 1]} : vector<16x32xbf16> to vector<16x8xbf16>
    %cst_11 = arith.constant dense<0.000000e+00> : vector<16x16xf32>
    %34 = tpu.matmul %31, %32, %cst_11 {dimension_numbers = #tpu.dot_dimension_numbers<[1], [1], [0], [0], [0, 0, 1, 0], [], []>} : vector<16x8xbf16>, vector<16x8xbf16>, vector<16x16xf32> -> vector<16x16xf32>
    %cst_12 = arith.constant dense<0xFF800000> : vector<16xf32>
    %35 = vector.multi_reduction <maximumf>, %34, %cst_12 [1] : vector<16x16xf32> to vector<16xf32>
    %36 = vector.shape_cast %35 : vector<16xf32> to vector<16x1xf32>
    %37 = vector.broadcast %36 : vector<16x1xf32> to vector<16x16xf32>
    %38 = arith.subf %34, %37 : vector<16x16xf32>
    %39 = math.exp %38 : vector<16x16xf32>
    %cst_13 = arith.constant dense<0.000000e+00> : vector<16xf32>
    %40 = vector.multi_reduction <add>, %39, %cst_13 [1] : vector<16x16xf32> to vector<16xf32>
    %41 = vector.shape_cast %40 : vector<16xf32> to vector<16x1xf32>
    %42 = vector.broadcast %41 : vector<16x1xf32> to vector<16x16xf32>
    %43 = arith.divf %39, %42 : vector<16x16xf32>
    %44 = arith.truncf %43 : vector<16x16xf32> to vector<16x16xbf16>
    %cst_14 = arith.constant dense<0.000000e+00> : vector<16x8xf32>
    %45 = tpu.matmul %44, %33, %cst_14 {dimension_numbers = #tpu.dot_dimension_numbers<[1], [0], [0], [1], [0, 0, 1, 1], [], []>} : vector<16x16xbf16>, vector<16x8xbf16>, vector<16x8xf32> -> vector<16x8xf32>
    %46 = vector.extract_strided_slice %11 {offsets = [0, 16], sizes = [16, 8], strides = [1, 1]} : vector<16x32xbf16> to vector<16x8xbf16>
    %47 = vector.extract_strided_slice %13 {offsets = [0, 16], sizes = [16, 8], strides = [1, 1]} : vector<16x32xbf16> to vector<16x8xbf16>
    %48 = vector.extract_strided_slice %15 {offsets = [0, 16], sizes = [16, 8], strides = [1, 1]} : vector<16x32xbf16> to vector<16x8xbf16>
    %cst_15 = arith.constant dense<0.000000e+00> : vector<16x16xf32>
    %49 = tpu.matmul %46, %47, %cst_15 {dimension_numbers = #tpu.dot_dimension_numbers<[1], [1], [0], [0], [0, 0, 1, 0], [], []>} : vector<16x8xbf16>, vector<16x8xbf16>, vector<16x16xf32> -> vector<16x16xf32>
    %cst_16 = arith.constant dense<0xFF800000> : vector<16xf32>
    %50 = vector.multi_reduction <maximumf>, %49, %cst_16 [1] : vector<16x16xf32> to vector<16xf32>
    %51 = vector.shape_cast %50 : vector<16xf32> to vector<16x1xf32>
    %52 = vector.broadcast %51 : vector<16x1xf32> to vector<16x16xf32>
    %53 = arith.subf %49, %52 : vector<16x16xf32>
    %54 = math.exp %53 : vector<16x16xf32>
    %cst_17 = arith.constant dense<0.000000e+00> : vector<16xf32>
    %55 = vector.multi_reduction <add>, %54, %cst_17 [1] : vector<16x16xf32> to vector<16xf32>
    %56 = vector.shape_cast %55 : vector<16xf32> to vector<16x1xf32>
    %57 = vector.broadcast %56 : vector<16x1xf32> to vector<16x16xf32>
    %58 = arith.divf %54, %57 : vector<16x16xf32>
    %59 = arith.truncf %58 : vector<16x16xf32> to vector<16x16xbf16>
    %cst_18 = arith.constant dense<0.000000e+00> : vector<16x8xf32>
    %60 = tpu.matmul %59, %48, %cst_18 {dimension_numbers = #tpu.dot_dimension_numbers<[1], [0], [0], [1], [0, 0, 1, 1], [], []>} : vector<16x16xbf16>, vector<16x8xbf16>, vector<16x8xf32> -> vector<16x8xf32>
    %61 = vector.extract_strided_slice %11 {offsets = [0, 24], sizes = [16, 8], strides = [1, 1]} : vector<16x32xbf16> to vector<16x8xbf16>
    %62 = vector.extract_strided_slice %13 {offsets = [0, 24], sizes = [16, 8], strides = [1, 1]} : vector<16x32xbf16> to vector<16x8xbf16>
    %63 = vector.extract_strided_slice %15 {offsets = [0, 24], sizes = [16, 8], strides = [1, 1]} : vector<16x32xbf16> to vector<16x8xbf16>
    %cst_19 = arith.constant dense<0.000000e+00> : vector<16x16xf32>
    %64 = tpu.matmul %61, %62, %cst_19 {dimension_numbers = #tpu.dot_dimension_numbers<[1], [1], [0], [0], [0, 0, 1, 0], [], []>} : vector<16x8xbf16>, vector<16x8xbf16>, vector<16x16xf32> -> vector<16x16xf32>
    %cst_20 = arith.constant dense<0xFF800000> : vector<16xf32>
    %65 = vector.multi_reduction <maximumf>, %64, %cst_20 [1] : vector<16x16xf32> to vector<16xf32>
    %66 = vector.shape_cast %65 : vector<16xf32> to vector<16x1xf32>
    %67 = vector.broadcast %66 : vector<16x1xf32> to vector<16x16xf32>
    %68 = arith.subf %64, %67 : vector<16x16xf32>
    %69 = math.exp %68 : vector<16x16xf32>
    %cst_21 = arith.constant dense<0.000000e+00> : vector<16xf32>
    %70 = vector.multi_reduction <add>, %69, %cst_21 [1] : vector<16x16xf32> to vector<16xf32>
    %71 = vector.shape_cast %70 : vector<16xf32> to vector<16x1xf32>
    %72 = vector.broadcast %71 : vector<16x1xf32> to vector<16x16xf32>
    %73 = arith.divf %69, %72 : vector<16x16xf32>
    %74 = arith.truncf %73 : vector<16x16xf32> to vector<16x16xbf16>
    %cst_22 = arith.constant dense<0.000000e+00> : vector<16x8xf32>
    %75 = tpu.matmul %74, %63, %cst_22 {dimension_numbers = #tpu.dot_dimension_numbers<[1], [0], [0], [1], [0, 0, 1, 1], [], []>} : vector<16x16xbf16>, vector<16x8xbf16>, vector<16x8xf32> -> vector<16x8xf32>
    %76 = tpu.concatenate %30, %45, %60, %75 in 1 : vector<16x8xf32>, vector<16x8xf32>, vector<16x8xf32>, vector<16x8xf32> -> vector<16x32xf32>
    %77 = arith.truncf %76 : vector<16x32xf32> to vector<16x32xbf16>
    %c0_23 = arith.constant 0 : index
    %c0_24 = arith.constant 0 : index
    %78 = vector.load %arg3[%c0_23, %c0_24] : memref<32x32xbf16, #tpu.memory_space<vmem>>, vector<32x32xbf16>
    %cst_25 = arith.constant dense<0.000000e+00> : vector<16x32xf32>
    %79 = tpu.matmul %77, %78, %cst_25 {dimension_numbers = #tpu.dot_dimension_numbers<[1], [0], [0], [1], [0, 0, 1, 1], [], []>} : vector<16x32xbf16>, vector<32x32xbf16>, vector<16x32xf32> -> vector<16x32xf32>
    %c0_26 = arith.constant 0 : index
    %c0_27 = arith.constant 0 : index
    %80 = vector.load %arg5[%c0_26, %c0_27] : memref<1x32xf32, #tpu.memory_space<vmem>>, vector<1x32xf32>
    %81 = vector.broadcast %80 : vector<1x32xf32> to vector<16x32xf32>
    %82 = arith.addf %79, %81 : vector<16x32xf32>
    %83 = arith.addf %1, %82 : vector<16x32xf32>
    %c0_28 = arith.constant 0 : index
    %c0_29 = arith.constant 0 : index
    %c0_30 = arith.constant 0 : index
    %84 = vector.load %arg6[%c0_28, %c0_29, %c0_30] : memref<1x16x32xf32, #tpu.memory_space<vmem>>, vector<1x16x32xf32>
    %85 = vector.shape_cast %84 : vector<1x16x32xf32> to vector<16x32xf32>
    %86 = vector.shape_cast %83 : vector<16x32xf32> to vector<1x16x32xf32>
    tpu.vector_store %arg6[%c0_28, %c0_29, %c0_30], %86 {strides = array<i32>} : memref<1x16x32xf32, #tpu.memory_space<vmem>>, vector<1x16x32xf32>,
    return
  }
  func.func @transform_0(%arg0: i32) -> (i32, i32, i32) {
    %c0_i32 = arith.constant 0 : i32
    %c0_i32_0 = arith.constant 0 : i32
    %c0_i32_1 = arith.constant 0 : i32
    return %arg0, %c0_i32, %c0_i32_0 : i32, i32, i32
  }
  func.func @transform_1(%arg0: i32) -> (i32, i32) {
    %c0_i32 = arith.constant 0 : i32
    %c0_i32_0 = arith.constant 0 : i32
    %c0_i32_1 = arith.constant 0 : i32
    return %c0_i32, %c0_i32_0 : i32, i32
  }
  func.func @transform_2(%arg0: i32) -> (i32, i32) {
    %c0_i32 = arith.constant 0 : i32
    %c0_i32_0 = arith.constant 0 : i32
    %c0_i32_1 = arith.constant 0 : i32
    return %c0_i32, %c0_i32_0 : i32, i32
  }
  func.func @transform_3(%arg0: i32) -> (i32, i32) {
    %c0_i32 = arith.constant 0 : i32
    %c0_i32_0 = arith.constant 0 : i32
    %c0_i32_1 = arith.constant 0 : i32
    return %c0_i32, %c0_i32_0 : i32, i32
  }
  func.func @transform_4(%arg0: i32) -> (i32, i32) {
    %c0_i32 = arith.constant 0 : i32
    %c0_i32_0 = arith.constant 0 : i32
    %c0_i32_1 = arith.constant 0 : i32
    return %c0_i32, %c0_i32_0 : i32, i32
  }
  func.func @transform_5(%arg0: i32) -> (i32, i32, i32) {
    %c0_i32 = arith.constant 0 : i32
    %c0_i32_0 = arith.constant 0 : i32
    %c0_i32_1 = arith.constant 0 : i32
    return %arg0, %c0_i32, %c0_i32_0 : i32, i32, i32
  }
}

</mosaic_0001>

<llo_original>
// kernel: tpu_custom_call.1
$region0: #{tpu_custom_call.1}
  #allocation0 [shape = 'u32[]', space=smem, size = 0x4, offset = 0x4, fixed_abs, tag = 'smem constant byte address 0x4 - core index']
  #allocation1 [shape = 'u32[144,128]{1,0:T(1,128)}', space=vmem, size = 0x12000, scoped, tag = 'internal scratch']
  %s0 = inlined_call_operand.hbm [shape: f32[2,16,32], index: 0, kind: input, shape index: {}]
  %s1 = inlined_call_operand.hbm [shape: bf16[32,96], index: 1, kind: input, shape index: {}]
  %s2 = inlined_call_operand.hbm [shape: bf16[32,32], index: 2, kind: input, shape index: {}]
  %s3 = inlined_call_operand.vmem [shape: f32[1,96], index: 3, kind: input, shape index: {}]
  %s4 = inlined_call_operand.vmem [shape: f32[1,32], index: 4, kind: input, shape index: {}]
  %s5 = inlined_call_operand.hbm [shape: f32[2,16,32], index: 5, kind: output, shape index: {}]
  %s6 = sld [smem:[#allocation0]]
  $region65: #{tpu_custom_call.1} parent=0
    _
  %s8 = ssub.s32 1, %s6
  %s9 = scalar_select 0, %s8, %s6
  $region1: #{tpu_custom_call.1} parent=0
    #allocation2 [shape = 'u8[16384]{0}', space=vmem, size = 0x4000, scoped, tag = 'input window, operand 0']
    #allocation3 [shape = 's32[2]{0}', space=sflag, size = 0x8, scoped, tag = 'scoped memory for tpu_custom_call.1']
    #allocation4 [shape = 's32[2]{0}', space=sflag, size = 0x8, scoped, tag = 'scoped memory for tpu_custom_call.1']
    #allocation5 [shape = 'u8[8192]{0}', space=vmem, size = 0x2000, scoped, tag = 'input window, operand 1, single buffered']
    #allocation6 [shape = 's32[1]{0}', space=sflag, size = 0x4, scoped, tag = 'scoped memory for tpu_custom_call.1']
    #allocation7 [shape = 'u8[8192]{0}', space=vmem, size = 0x2000, scoped, tag = 'input window, operand 2, single buffered']
    #allocation8 [shape = 'u8[16384]{0}', space=vmem, size = 0x4000, scoped, tag = 'output window, operand 0']
    %10 = vsyncpa [#allocation3], 0
    %s11 = scalar_lea.sflag [#allocation3], 1
    %12 = vsyncpa %s11, 0
    %13 = vsyncpa [#allocation6], 0
    %14 = vsyncpa [#allocation4], 0
    %s15 = scalar_lea.sflag [#allocation4], 1
    %16 = vsyncpa %s15, 0
    loop: start=0, step=1, limit=4
    $region2: #{tpu_custom_call.1} parent=1 // loop_pre_header
      _
    $region3: #{tpu_custom_call.1} parent=1 // loop_header
      %s18 = sphi 0, %s22
      %p19 = scmp.ge.s32.totalorder %s18, 4
      %s28 = sphi 0, %s30
      %s31 = sphi 0, %s28
      %s32 = sphi 0, %s31
      %s48 = sphi 0, %s32
      %s52 = sphi 0, %s52
      %s54 = sphi 0, %s52
      %s55 = sphi 0, %s54
      %s69 = sphi 0, %s55
      %s73 = sphi 0, %s73
      %s75 = sphi 0, %s73
      %s76 = sphi 0, %s75
      %s90 = sphi 0, %s76
      %s94 = sphi 0, %s94
      %s96 = sphi 0, %s94
      %s97 = sphi 0, %s96
      %s111 = sphi 0, %s97
      %s115 = sphi 0, %s115
      %s117 = sphi 0, %s115
      %s118 = sphi 0, %s117
      %s132 = sphi 0, %s118
      %s138 = sphi 0, %s140
      %s141 = sphi 0, %s138
      %s142 = sphi 0, %s141
      %s158 = sphi 0, %s142
    $region4: #{tpu_custom_call.1} parent=1 // loop_header_branch
      %21 = sbr.rel (%p19) target = $region8
    $region5: #{tpu_custom_call.1} parent=1 // loop_body
      %s23 = ssub.s32 %s18, 1
      %s24 = ssub.s32 %s18, 2
      %s25 = sadd.s32 %s18, 1
      %s26 = ssub.s32 %s18, %s25
      %p27 = scmp.eq.s32.totalorder %s26, 0
      %s29 = sadd.s32 %s28, 1
      %s30 = scalar_select %p27, %s28, %s29
      %p33 = pneg %p27
      %p34 = scmp.eq.s32.totalorder %s18, 1
      %p35 = por %p33, %p34
      %p36 = scmp.ne.s32.totalorder %s28, %s31
      %p37 = scmp.eq.s32.totalorder %s18, 0
      %p38 = por %p36, %p37
      %p39 = scmp.ne.s32.totalorder %s28, %s31
      %p40 = scmp.eq.s32.totalorder %s23, 1
      %p41 = por %p39, %p40
      %p42 = scmp.ne.s32.totalorder %s31, %s32
      %p43 = scmp.eq.s32.totalorder %s23, 0
      %p44 = por %p42, %p43
      %p45 = scmp.ne.s32.totalorder %s31, %s32
      %p46 = scmp.eq.s32.totalorder %s24, 1
      %p47 = por %p45, %p46
      %p49 = scmp.ne.s32.totalorder %s32, %s48
      %p50 = scmp.eq.s32.totalorder %s24, 0
      %p51 = por %p49, %p50
      %s53 = sadd.s32 %s52, 1
      %p56 = scmp.eq.s32.totalorder %s18, 1
      %p57 = scmp.ne.s32.totalorder %s52, %s54
      %p58 = scmp.eq.s32.totalorder %s18, 0
      %p59 = por %p57, %p58
      %p60 = scmp.ne.s32.totalorder %s52, %s54
      %p61 = scmp.eq.s32.totalorder %s23, 1
      %p62 = por %p60, %p61
      %p63 = scmp.ne.s32.totalorder %s54, %s55
      %p64 = scmp.eq.s32.totalorder %s23, 0
      %p65 = por %p63, %p64
      %p66 = scmp.ne.s32.totalorder %s54, %s55
      %p67 = scmp.eq.s32.totalorder %s24, 1
      %p68 = por %p66, %p67
      %p70 = scmp.ne.s32.totalorder %s55, %s69
      %p71 = scmp.eq.s32.totalorder %s24, 0
      %p72 = por %p70, %p71
      %s74 = sadd.s32 %s73, 1
      %p77 = scmp.eq.s32.totalorder %s18, 1
      %p78 = scmp.ne.s32.totalorder %s73, %s75
      %p79 = scmp.eq.s32.totalorder %s18, 0
      %p80 = por %p78, %p79
      %p81 = scmp.ne.s32.totalorder %s73, %s75
      %p82 = scmp.eq.s32.totalorder %s23, 1
      %p83 = por %p81, %p82
      %p84 = scmp.ne.s32.totalorder %s75, %s76
      %p85 = scmp.eq.s32.totalorder %s23, 0
      %p86 = por %p84, %p85
      %p87 = scmp.ne.s32.totalorder %s75, %s76
      %p88 = scmp.eq.s32.totalorder %s24, 1
      %p89 = por %p87, %p88
      %p91 = scmp.ne.s32.totalorder %s76, %s90
      %p92 = scmp.eq.s32.totalorder %s24, 0
      %p93 = por %p91, %p92
      %s95 = sadd.s32 %s94, 1
      %p98 = scmp.eq.s32.totalorder %s18, 1
      %p99 = scmp.ne.s32.totalorder %s94, %s96
      %p100 = scmp.eq.s32.totalorder %s18, 0
      %p101 = por %p99, %p100
      %p102 = scmp.ne.s32.totalorder %s94, %s96
      %p103 = scmp.eq.s32.totalorder %s23, 1
      %p104 = por %p102, %p103
      %p105 = scmp.ne.s32.totalorder %s96, %s97
      %p106 = scmp.eq.s32.totalorder %s23, 0
      %p107 = por %p105, %p106
      %p108 = scmp.ne.s32.totalorder %s96, %s97
      %p109 = scmp.eq.s32.totalorder %s24, 1
      %p110 = por %p108, %p109
      %p112 = scmp.ne.s32.totalorder %s97, %s111
      %p113 = scmp.eq.s32.totalorder %s24, 0
      %p114 = por %p112, %p113
      %s116 = sadd.s32 %s115, 1
      %p119 = scmp.eq.s32.totalorder %s18, 1
      %p120 = scmp.ne.s32.totalorder %s115, %s117
      %p121 = scmp.eq.s32.totalorder %s18, 0
      %p122 = por %p120, %p121
      %p123 = scmp.ne.s32.totalorder %s115, %s117
      %p124 = scmp.eq.s32.totalorder %s23, 1
      %p125 = por %p123, %p124
      %p126 = scmp.ne.s32.totalorder %s117, %s118
      %p127 = scmp.eq.s32.totalorder %s23, 0
      %p128 = por %p126, %p127
      %p129 = scmp.ne.s32.totalorder %s117, %s118
      %p130 = scmp.eq.s32.totalorder %s24, 1
      %p131 = por %p129, %p130
      %p133 = scmp.ne.s32.totalorder %s118, %s132
      %p134 = scmp.eq.s32.totalorder %s24, 0
      %p135 = por %p133, %p134
      %s136 = ssub.s32 %s18, %s25
      %p137 = scmp.eq.s32.totalorder %s136, 0
      %s139 = sadd.s32 %s138, 1
      %s140 = scalar_select %p137, %s138, %s139
      %p143 = pneg %p137
      %p144 = scmp.eq.s32.totalorder %s18, 1
      %p145 = por %p143, %p144
      %p146 = scmp.ne.s32.totalorder %s138, %s141
      %p147 = scmp.eq.s32.totalorder %s18, 0
      %p148 = por %p146, %p147
      %p149 = scmp.ne.s32.totalorder %s138, %s141
      %p150 = scmp.eq.s32.totalorder %s23, 1
      %p151 = por %p149, %p150
      %p152 = scmp.ne.s32.totalorder %s141, %s142
      %p153 = scmp.eq.s32.totalorder %s23, 0
      %p154 = por %p152, %p153
      %p155 = scmp.ne.s32.totalorder %s141, %s142
      %p156 = scmp.eq.s32.totalorder %s24, 1
      %p157 = por %p155, %p156
      %p159 = scmp.ne.s32.totalorder %s142, %s158
      %p160 = scmp.eq.s32.totalorder %s24, 0
      %p161 = por %p159, %p160
      %p162 = scmp.le.s32.totalorder 1, %s18
      %p163 = scmp.lt.s32.totalorder %s18, 3
      %p164 = pnand %p162, %p163
      %p165 = pneg %p164
      // Predicated region
      $region9: #{tpu_custom_call.1} parent=5 // pred_check
        _
      $region10: #{tpu_custom_call.1} parent=5 // pred_check_branch
        %167 = sbr.rel (%p164) target = $region12
      $region11: #{tpu_custom_call.1} parent=5 // pred_region
        %s168 = ssub.s32 %s18, 1
        // Predicated region
        $region13: #{tpu_custom_call.1} parent=11 // pred_check
          %p169 = pneg %p65
        $region14: #{tpu_custom_call.1} parent=11 // pred_check_branch
          %171 = sbr.rel (%p169) target = $region16
        $region15: #{tpu_custom_call.1} parent=11 // pred_region
          %s173 = ssub.s32 256, 256
          %174 = vsyncadd [#allocation6], %s173
          %s175 = sshll.u32 [#allocation5], 4
          %s176 = int_to_ptr.vmem [resolvable:$true] %s175
          %181 = dma.hbm_to_vmem [thread:$0]  %s1, 256, %s176, [#allocation6], 64, 64, 4
        $region16: #{tpu_custom_call.1} parent=11 // pred_fallthru
          _
        // Predicated region
        $region17: #{tpu_custom_call.1} parent=11 // pred_check
          %p182 = pneg %p86
        $region18: #{tpu_custom_call.1} parent=11 // pred_check_branch
          %184 = sbr.rel (%p182) target = $region20
        $region19: #{tpu_custom_call.1} parent=11 // pred_region
          %s186 = ssub.s32 256, 256
          %187 = vsyncadd [#allocation6], %s186
          %s188 = sshll.u32 [#allocation7], 4
          %s189 = int_to_ptr.vmem [resolvable:$true] %s188
          %194 = dma.hbm_to_vmem [thread:$0]  %s2, 256, %s189, [#allocation6], 64, 64, 4
        $region20: #{tpu_custom_call.1} parent=11 // pred_fallthru
          _
        // Predicated region
        $region21: #{tpu_custom_call.1} parent=11 // pred_check
          %p195 = pneg %p107
        $region22: #{tpu_custom_call.1} parent=11 // pred_check_branch
          %197 = sbr.rel (%p195) target = $region24
        $region23: #{tpu_custom_call.1} parent=11 // pred_region
          _
        $region24: #{tpu_custom_call.1} parent=11 // pred_fallthru
          _
        // Predicated region
        $region25: #{tpu_custom_call.1} parent=11 // pred_check
          %p198 = pneg %p128
        $region26: #{tpu_custom_call.1} parent=11 // pred_check_branch
          %200 = sbr.rel (%p198) target = $region28
        $region27: #{tpu_custom_call.1} parent=11 // pred_region
          _
        $region28: #{tpu_custom_call.1} parent=11 // pred_fallthru
          _
      $region12: #{tpu_custom_call.1} parent=5 // pred_fallthru
        _
      %p201 = scmp.lt.s32.totalorder %s18, 2
      // Predicated region
      $region29: #{tpu_custom_call.1} parent=5 // pred_check
        %p202 = pneg %p201
      $region30: #{tpu_custom_call.1} parent=5 // pred_check_branch
        %204 = sbr.rel (%p202) target = $region32
      $region31: #{tpu_custom_call.1} parent=5 // pred_region
        // Predicated region
        $region33: #{tpu_custom_call.1} parent=31 // pred_check
          %p205 = pneg %p38
        $region34: #{tpu_custom_call.1} parent=31 // pred_check_branch
          %207 = sbr.rel (%p205) target = $region36
        $region35: #{tpu_custom_call.1} parent=31 // pred_region
          %s208 = sand.u32 %s28, 1
          %s209 = scalar_lea.sflag [#allocation3], %s208
          %s210 = sand.u32 %s28, 1
          %s211 = smul.addr %s210, 16
          %s212 = scalar_lea.vmem [#allocation2], %s211
          %s214 = ssub.s32 256, 256
          %215 = vsyncadd %s209, %s214
          %s216 = smul.addr %s18, 2
          %s217 = smul.addr %s216, 128
          %s218 = scalar_lea.hbm %s0, %s217
          %s219 = sshll.u32 %s212, 4
          %s220 = int_to_ptr.vmem [resolvable:$true] %s219
          %225 = dma.hbm_to_vmem [thread:$0]  %s218, 256, %s220, %s209, 128, 128, 8
        $region36: #{tpu_custom_call.1} parent=31 // pred_fallthru
          _
      $region32: #{tpu_custom_call.1} parent=5 // pred_fallthru
        _
      %p226 = scmp.le.s32.totalorder 1, %s18
      %p227 = scmp.lt.s32.totalorder %s18, 3
      %p228 = pnand %p226, %p227
      %p229 = pneg %p228
      // Predicated region
      $region37: #{tpu_custom_call.1} parent=5 // pred_check
        _
      $region38: #{tpu_custom_call.1} parent=5 // pred_check_branch
        %231 = sbr.rel (%p228) target = $region40
      $region39: #{tpu_custom_call.1} parent=5 // pred_region
        %s232 = ssub.s32 %s18, 1
        %s233 = sand.u32 %s31, 1
        %s234 = scalar_lea.sflag [#allocation3], %s233
        %s235 = sand.u32 %s31, 1
        %s236 = smul.addr %s235, 16
        %s237 = scalar_lea.vmem [#allocation2], %s236
        // Predicated region
        $region41: #{tpu_custom_call.1} parent=39 // pred_check
          %p238 = pneg %p44
        $region42: #{tpu_custom_call.1} parent=39 // pred_check_branch
          %240 = sbr.rel (%p238) target = $region44
        $region43: #{tpu_custom_call.1} parent=39 // pred_region
          %241 = dma.done %s234, 256
        $region44: #{tpu_custom_call.1} parent=39 // pred_fallthru
          _
        // Predicated region
        $region45: #{tpu_custom_call.1} parent=39 // pred_check
          %p242 = pneg %p65
        $region46: #{tpu_custom_call.1} parent=39 // pred_check_branch
          %244 = sbr.rel (%p242) target = $region48
        $region47: #{tpu_custom_call.1} parent=39 // pred_region
          %245 = dma.done [#allocation6], 256
        $region48: #{tpu_custom_call.1} parent=39 // pred_fallthru
          _
        // Predicated region
        $region49: #{tpu_custom_call.1} parent=39 // pred_check
          %p246 = pneg %p86
        $region50: #{tpu_custom_call.1} parent=39 // pred_check_branch
          %248 = sbr.rel (%p246) target = $region52
        $region51: #{tpu_custom_call.1} parent=39 // pred_region
          %249 = dma.done [#allocation6], 256
        $region52: #{tpu_custom_call.1} parent=39 // pred_fallthru
          _
        %s250 = sand.u32 %s31, 1
        %s251 = scalar_lea.sflag [#allocation3], %s250
        %s252 = sand.u32 %s31, 1
        %s253 = smul.addr %s252, 16
        %s254 = scalar_lea.vmem [#allocation2], %s253
        %p255 = pneg %p44
        %p256 = pneg %p41
        %p257 = pneg %p65
        %p258 = pneg %p62
        %p259 = pneg %p86
        %p260 = pneg %p83
        %p261 = pneg %p107
        %p262 = pneg %p104
        %p263 = pneg %p128
        %p264 = pneg %p125
        %p265 = pneg %p154
        %p266 = pneg %p151
        %s267 = sand.u32 %s141, 1
        %s268 = scalar_lea.sflag [#allocation4], %s267
        %s269 = sand.u32 %s141, 1
        %s270 = smul.addr %s269, 16
        %s271 = scalar_lea.vmem [#allocation8], %s270
        %v273 = vld [vmem:[%s237] sm:$0xff]
        %v274 = vld [vmem:[%s237 + $0x8] sm:$0xff]
        %v275 = vpack.c.bf16 %v274, %v273
        %v276 = vld [vmem:[#allocation5] sm:$0xf]
        %v277 = vld [vmem:[#allocation5 + $0x4] sm:$0xf]
        %v278 = vld [vmem:[#allocation5 + $0x8] sm:$0xf]
        %v279 = vld [vmem:[#allocation5 + $0xc] sm:$0xf]
        %v280 = vld [vmem:[%s3] sm:$0x1]
        %v282 = vlaneseq
        %v283 = vshrl.u32 %v282, 7
        %v284 = vsub.s32 0, %v283
        %v285 = vrot.slane %v280, %v284
        %v291 = vunpack.c.l.b16 %v276
        %v292 = vunpack.c.l.b16 %v277
        %v293 = vunpack.c.l.b16 %v278
        %v294 = vunpack.c.l.b16 %v279
        %v295 = vpack.c.b16 %v292, %v291
        %v296 = vpack.c.b16 %v294, %v293
        %vm299 = vcmask 261120
        %v301 = vsel %vm299, %v275, 0
        %303 = vmatprep.subr.bf16.mxu0 0
        %304 = vmatpush1.bf16.msra.mxu0 %v295
        %305 = vmatprep.subr.bf16.mxu0 0
        %306 = vmatpush1.bf16.msra.mxu0 %v296
        %307 = vmatprep.subr.bf16.mxu0 0
        %308 = vmatpush1.bf16.msra.mxu0 0
        %309 = vmatprep.subr.bf16.mxu0 0
        %310 = vmatpush1.bf16.msra.mxu0 0
        %311 = vmatprep.subr.bf16.mxu0 0
        %312 = vmatpush1.bf16.msra.mxu0 0
        %313 = vmatprep.subr.bf16.mxu0 0
        %314 = vmatpush1.bf16.msra.mxu0 0
        %315 = vmatprep.subr.bf16.mxu0 0
        %316 = vmatpush1.bf16.msra.mxu0 0
        %317 = vmatprep.subr.bf16.mxu0 0
        %318 = vmatpush1.bf16.msra.mxu0 0
        %319 = vmatprep.subr.bf16.mxu0 0
        %320 = vmatpush1.bf16.msra.mxu0 0
        %321 = vmatprep.subr.bf16.mxu0 0
        %322 = vmatpush1.bf16.msra.mxu0 0
        %323 = vmatprep.subr.bf16.mxu0 0
        %324 = vmatpush1.bf16.msra.mxu0 0
        %325 = vmatprep.subr.bf16.mxu0 0
        %326 = vmatpush1.bf16.msra.mxu0 0
        %327 = vmatprep.subr.bf16.mxu0 0
        %328 = vmatpush1.bf16.msra.mxu0 0
        %329 = vmatprep.subr.bf16.mxu0 0
        %330 = vmatpush1.bf16.msra.mxu0 0
        %331 = vmatprep.subr.bf16.mxu0 0
        %332 = vmatpush1.bf16.msra.mxu0 0
        %333 = vmatprep.subr.bf16.mxu0 0
        %334 = vmatpush1.bf16.msra.mxu0 0
        %335 = vmatprep.mubr.bf16.mxu0 0
        %336 = vmatmul.mubr.bf16.gmra.mrb[0].mxu0 %v301
        %v337 = vpop.f32.mrb[0].mxu0
        %v338 = vadd.f32 %v285, %v337
        %v339 = vpop.f32.mrb[0].mxu0
        %v340 = vpop.f32.mrb[0].mxu0
        %v341 = vadd.f32 %v285, %v340
        %v342 = vpop.f32.mrb[0].mxu0
        %343 = vdwg.mxu0
        %v344 = vmul.f32 %v338, 0.35355338
        %v345 = vmul.f32 %v341, 0.35355338
        %v346 = vpack.c.bf16 %v345, %v344
        %v347 = vpack.c.bf16 %v341, %v338
        %349 = vrot.lane.b32.xlu0 %v347, 96
        %v350 = vpop.permute.xlu0 %349
        %vm351 = vcmask 64512
        %v353 = vsel %vm351, %v346, 0
        %v356 = vsel %vm351, %v350, 0
        %358 = vmatprep.subr.bf16.mxu0 0
        %359 = vmatpush1.bf16.xpose.msra.mxu0 %v356
        %360 = vmatprep.subr.bf16.mxu0 0
        %361 = vmatpush1.bf16.xpose.msra.mxu0 0
        %362 = vmatprep.subr.bf16.mxu0 0
        %363 = vmatpush1.bf16.xpose.msra.mxu0 0
        %364 = vmatprep.subr.bf16.mxu0 0
        %365 = vmatpush1.bf16.xpose.msra.mxu0 0
        %366 = vmatprep.subr.bf16.mxu0 0
        %367 = vmatpush1.bf16.xpose.msra.mxu0 0
        %368 = vmatprep.subr.bf16.mxu0 0
        %369 = vmatpush1.bf16.xpose.msra.mxu0 0
        %370 = vmatprep.subr.bf16.mxu0 0
        %371 = vmatpush1.bf16.xpose.msra.mxu0 0
        %372 = vmatprep.subr.bf16.mxu0 0
        %373 = vmatpush1.bf16.xpose.msra.mxu0 0
        %374 = vmatprep.subr.bf16.mxu0 0
        %375 = vmatpush1.bf16.xpose.msra.mxu0 0
        %376 = vmatprep.subr.bf16.mxu0 0
        %377 = vmatpush1.bf16.xpose.msra.mxu0 0
        %378 = vmatprep.subr.bf16.mxu0 0
        %379 = vmatpush1.bf16.xpose.msra.mxu0 0
        %380 = vmatprep.subr.bf16.mxu0 0
        %381 = vmatpush1.bf16.xpose.msra.mxu0 0
        %382 = vmatprep.subr.bf16.mxu0 0
        %383 = vmatpush1.bf16.xpose.msra.mxu0 0
        %384 = vmatprep.subr.bf16.mxu0 0
        %385 = vmatpush1.bf16.xpose.msra.mxu0 0
        %386 = vmatprep.subr.bf16.mxu0 0
        %387 = vmatpush1.bf16.xpose.msra.mxu0 0
        %388 = vmatprep.subr.bf16.mxu0 0
        %389 = vmatpush1.bf16.xpose.msra.mxu0 0
        %390 = vmatprep.mubr.bf16.mxu0 0
        %391 = vmatmul.mubr.bf16.gmra.mrb[0].mxu0 %v353
        %v392 = vpop.f32.mrb[0].mxu0
        %v393 = vadd.f32 0.0, %v392
        %v394 = vpop.f32.mrb[0].mxu0
        %v395 = vpop.f32.mrb[0].mxu0
        %v396 = vadd.f32 0.0, %v395
        %v397 = vpop.f32.mrb[0].mxu0
        %398 = vdwg.mxu0
        %vm399 = vcmask 130048
        %v400 = vsel %vm399, %v393, -inf
        %401 = vmax.xlane.f32.xlu0 %v400
        %v402 = vpop.xlane.xlu0 %401
        %v403 = vsel %vm399, %v396, -inf
        %404 = vmax.xlane.f32.xlu0 %v403
        %v405 = vpop.xlane.xlu0 %404
        %v406 = vsub.f32 %v393, %v402
        %v407 = vsub.f32 %v396, %v405
        %v408 = vmul.f32 %v406, 1.442695
        %v409 = vpow.pop %v408
        %v410 = vmul.f32 %v407, 1.442695
        %v411 = vpow.pop %v410
        %v412 = vsel %vm399, %v409, 0.0
        %413 = vadd.xlane.f32.xlu0 %v412
        %v414 = vpop.xlane.xlu0 %413
        %v415 = vsel %vm399, %v411, 0.0
        %416 = vadd.xlane.f32.xlu0 %v415
        %v417 = vpop.xlane.xlu0 %416
        %v418 = vrcp.pop %v414
        %v419 = vmul.f32 %v409, %v418
        %v420 = vrcp.pop %v417
        %v421 = vmul.f32 %v411, %v420
        %v422 = vpack.c.bf16 %v421, %v419
        %423 = vrot.lane.b32.xlu0 %v347, 64
        %v424 = vpop.permute.xlu0 %423
        %v427 = vsel %vm399, %v422, 0
        %429 = vmatprep.subr.bf16.mxu0 0
        %430 = vmatpush1.bf16.msra.mxu0 %v424
        %431 = vmatprep.subr.bf16.mxu0 0
        %432 = vmatpush1.bf16.msra.mxu0 0
        %433 = vmatprep.subr.bf16.mxu0 0
        %434 = vmatpush1.bf16.msra.mxu0 0
        %435 = vmatprep.subr.bf16.mxu0 0
        %436 = vmatpush1.bf16.msra.mxu0 0
        %437 = vmatprep.subr.bf16.mxu0 0
        %438 = vmatpush1.bf16.msra.mxu0 0
        %439 = vmatprep.subr.bf16.mxu0 0
        %440 = vmatpush1.bf16.msra.mxu0 0
        %441 = vmatprep.subr.bf16.mxu0 0
        %442 = vmatpush1.bf16.msra.mxu0 0
        %443 = vmatprep.subr.bf16.mxu0 0
        %444 = vmatpush1.bf16.msra.mxu0 0
        %445 = vmatprep.subr.bf16.mxu0 0
        %446 = vmatpush1.bf16.msra.mxu0 0
        %447 = vmatprep.subr.bf16.mxu0 0
        %448 = vmatpush1.bf16.msra.mxu0 0
        %449 = vmatprep.subr.bf16.mxu0 0
        %450 = vmatpush1.bf16.msra.mxu0 0
        %451 = vmatprep.subr.bf16.mxu0 0
        %452 = vmatpush1.bf16.msra.mxu0 0
        %453 = vmatprep.subr.bf16.mxu0 0
        %454 = vmatpush1.bf16.msra.mxu0 0
        %455 = vmatprep.subr.bf16.mxu0 0
        %456 = vmatpush1.bf16.msra.mxu0 0
        %457 = vmatprep.subr.bf16.mxu0 0
        %458 = vmatpush1.bf16.msra.mxu0 0
        %459 = vmatprep.subr.bf16.mxu0 0
        %460 = vmatpush1.bf16.msra.mxu0 0
        %461 = vmatprep.mubr.bf16.mxu0 0
        %462 = vmatmul.mubr.bf16.gmra.mrb[0].mxu0 %v427
        %v463 = vpop.f32.mrb[0].mxu0
        %v464 = vadd.f32 0.0, %v463
        %v465 = vpop.f32.mrb[0].mxu0
        %v466 = vpop.f32.mrb[0].mxu0
        %v467 = vadd.f32 0.0, %v466
        %v468 = vpop.f32.mrb[0].mxu0
        %469 = vdwg.mxu0
        %471 = vrot.lane.b32.xlu0 %v346, 120
        %v472 = vpop.permute.xlu0 %471
        %473 = vrot.lane.b32.xlu0 %v347, 88
        %v474 = vpop.permute.xlu0 %473
        %v476 = vsel %vm351, %v472, 0
        %v479 = vsel %vm351, %v474, 0
        %481 = vmatprep.subr.bf16.mxu0 0
        %482 = vmatpush1.bf16.xpose.msra.mxu0 %v479
        %483 = vmatprep.subr.bf16.mxu0 0
        %484 = vmatpush1.bf16.xpose.msra.mxu0 0
        %485 = vmatprep.subr.bf16.mxu0 0
        %486 = vmatpush1.bf16.xpose.msra.mxu0 0
        %487 = vmatprep.subr.bf16.mxu0 0
        %488 = vmatpush1.bf16.xpose.msra.mxu0 0
        %489 = vmatprep.subr.bf16.mxu0 0
        %490 = vmatpush1.bf16.xpose.msra.mxu0 0
        %491 = vmatprep.subr.bf16.mxu0 0
        %492 = vmatpush1.bf16.xpose.msra.mxu0 0
        %493 = vmatprep.subr.bf16.mxu0 0
        %494 = vmatpush1.bf16.xpose.msra.mxu0 0
        %495 = vmatprep.subr.bf16.mxu0 0
        %496 = vmatpush1.bf16.xpose.msra.mxu0 0
        %497 = vmatprep.subr.bf16.mxu0 0
        %498 = vmatpush1.bf16.xpose.msra.mxu0 0
        %499 = vmatprep.subr.bf16.mxu0 0
        %500 = vmatpush1.bf16.xpose.msra.mxu0 0
        %501 = vmatprep.subr.bf16.mxu0 0
        %502 = vmatpush1.bf16.xpose.msra.mxu0 0
        %503 = vmatprep.subr.bf16.mxu0 0
        %504 = vmatpush1.bf16.xpose.msra.mxu0 0
        %505 = vmatprep.subr.bf16.mxu0 0
        %506 = vmatpush1.bf16.xpose.msra.mxu0 0
        %507 = vmatprep.subr.bf16.mxu0 0
        %508 = vmatpush1.bf16.xpose.msra.mxu0 0
        %509 = vmatprep.subr.bf16.mxu0 0
        %510 = vmatpush1.bf16.xpose.msra.mxu0 0
        %511 = vmatprep.subr.bf16.mxu0 0
        %512 = vmatpush1.bf16.xpose.msra.mxu0 0
        %513 = vmatprep.mubr.bf16.mxu0 0
        %514 = vmatmul.mubr.bf16.gmra.mrb[0].mxu0 %v476
        %v515 = vpop.f32.mrb[0].mxu0
        %v516 = vadd.f32 0.0, %v515
        %v517 = vpop.f32.mrb[0].mxu0
        %v518 = vpop.f32.mrb[0].mxu0
        %v519 = vadd.f32 0.0, %v518
        %v520 = vpop.f32.mrb[0].mxu0
        %521 = vdwg.mxu0
        %v522 = vsel %vm399, %v516, -inf
        %523 = vmax.xlane.f32.xlu0 %v522
        %v524 = vpop.xlane.xlu0 %523
        %v525 = vsel %vm399, %v519, -inf
        %526 = vmax.xlane.f32.xlu0 %v525
        %v527 = vpop.xlane.xlu0 %526
        %v528 = vsub.f32 %v516, %v524
        %v529 = vsub.f32 %v519, %v527
        %v530 = vmul.f32 %v528, 1.442695
        %v531 = vpow.pop %v530
        %v532 = vmul.f32 %v529, 1.442695
        %v533 = vpow.pop %v532
        %v534 = vsel %vm399, %v531, 0.0
        %535 = vadd.xlane.f32.xlu0 %v534
        %v536 = vpop.xlane.xlu0 %535
        %v537 = vsel %vm399, %v533, 0.0
        %538 = vadd.xlane.f32.xlu0 %v537
        %v539 = vpop.xlane.xlu0 %538
        %v540 = vrcp.pop %v536
        %v541 = vmul.f32 %v531, %v540
        %v542 = vrcp.pop %v539
        %v543 = vmul.f32 %v533, %v542
        %v544 = vpack.c.bf16 %v543, %v541
        %545 = vrot.lane.b32.xlu0 %v347, 56
        %v546 = vpop.permute.xlu0 %545
        %v549 = vsel %vm399, %v544, 0
        %551 = vmatprep.subr.bf16.mxu0 0
        %552 = vmatpush1.bf16.msra.mxu0 %v546
        %553 = vmatprep.subr.bf16.mxu0 0
        %554 = vmatpush1.bf16.msra.mxu0 0
        %555 = vmatprep.subr.bf16.mxu0 0
        %556 = vmatpush1.bf16.msra.mxu0 0
        %557 = vmatprep.subr.bf16.mxu0 0
        %558 = vmatpush1.bf16.msra.mxu0 0
        %559 = vmatprep.subr.bf16.mxu0 0
        %560 = vmatpush1.bf16.msra.mxu0 0
        %561 = vmatprep.subr.bf16.mxu0 0
        %562 = vmatpush1.bf16.msra.mxu0 0
        %563 = vmatprep.subr.bf16.mxu0 0
        %564 = vmatpush1.bf16.msra.mxu0 0
        %565 = vmatprep.subr.bf16.mxu0 0
        %566 = vmatpush1.bf16.msra.mxu0 0
        %567 = vmatprep.subr.bf16.mxu0 0
        %568 = vmatpush1.bf16.msra.mxu0 0
        %569 = vmatprep.subr.bf16.mxu0 0
        %570 = vmatpush1.bf16.msra.mxu0 0
        %571 = vmatprep.subr.bf16.mxu0 0
        %572 = vmatpush1.bf16.msra.mxu0 0
        %573 = vmatprep.subr.bf16.mxu0 0
        %574 = vmatpush1.bf16.msra.mxu0 0
        %575 = vmatprep.subr.bf16.mxu0 0
        %576 = vmatpush1.bf16.msra.mxu0 0
        %577 = vmatprep.subr.bf16.mxu0 0
        %578 = vmatpush1.bf16.msra.mxu0 0
        %579 = vmatprep.subr.bf16.mxu0 0
        %580 = vmatpush1.bf16.msra.mxu0 0
        %581 = vmatprep.subr.bf16.mxu0 0
        %582 = vmatpush1.bf16.msra.mxu0 0
        %583 = vmatprep.mubr.bf16.mxu0 0
        %584 = vmatmul.mubr.bf16.gmra.mrb[0].mxu0 %v549
        %v585 = vpop.f32.mrb[0].mxu0
        %v586 = vadd.f32 0.0, %v585
        %v587 = vpop.f32.mrb[0].mxu0
        %v588 = vpop.f32.mrb[0].mxu0
        %v589 = vadd.f32 0.0, %v588
        %v590 = vpop.f32.mrb[0].mxu0
        %591 = vdwg.mxu0
        %592 = vrot.lane.b32.xlu0 %v346, 112
        %v593 = vpop.permute.xlu0 %592
        %594 = vrot.lane.b32.xlu0 %v347, 80
        %v595 = vpop.permute.xlu0 %594
        %v597 = vsel %vm351, %v593, 0
        %v600 = vsel %vm351, %v595, 0
        %602 = vmatprep.subr.bf16.mxu0 0
        %603 = vmatpush1.bf16.xpose.msra.mxu0 %v600
        %604 = vmatprep.subr.bf16.mxu0 0
        %605 = vmatpush1.bf16.xpose.msra.mxu0 0
        %606 = vmatprep.subr.bf16.mxu0 0
        %607 = vmatpush1.bf16.xpose.msra.mxu0 0
        %608 = vmatprep.subr.bf16.mxu0 0
        %609 = vmatpush1.bf16.xpose.msra.mxu0 0
        %610 = vmatprep.subr.bf16.mxu0 0
        %611 = vmatpush1.bf16.xpose.msra.mxu0 0
        %612 = vmatprep.subr.bf16.mxu0 0
        %613 = vmatpush1.bf16.xpose.msra.mxu0 0
        %614 = vmatprep.subr.bf16.mxu0 0
        %615 = vmatpush1.bf16.xpose.msra.mxu0 0
        %616 = vmatprep.subr.bf16.mxu0 0
        %617 = vmatpush1.bf16.xpose.msra.mxu0 0
        %618 = vmatprep.subr.bf16.mxu0 0
        %619 = vmatpush1.bf16.xpose.msra.mxu0 0
        %620 = vmatprep.subr.bf16.mxu0 0
        %621 = vmatpush1.bf16.xpose.msra.mxu0 0
        %622 = vmatprep.subr.bf16.mxu0 0
        %623 = vmatpush1.bf16.xpose.msra.mxu0 0
        %624 = vmatprep.subr.bf16.mxu0 0
        %625 = vmatpush1.bf16.xpose.msra.mxu0 0
        %626 = vmatprep.subr.bf16.mxu0 0
        %627 = vmatpush1.bf16.xpose.msra.mxu0 0
        %628 = vmatprep.subr.bf16.mxu0 0
        %629 = vmatpush1.bf16.xpose.msra.mxu0 0
        %630 = vmatprep.subr.bf16.mxu0 0
        %631 = vmatpush1.bf16.xpose.msra.mxu0 0
        %632 = vmatprep.subr.bf16.mxu0 0
        %633 = vmatpush1.bf16.xpose.msra.mxu0 0
        %634 = vmatprep.mubr.bf16.mxu0 0
        %635 = vmatmul.mubr.bf16.gmra.mrb[0].mxu0 %v597
        %v636 = vpop.f32.mrb[0].mxu0
        %v637 = vadd.f32 0.0, %v636
        %v638 = vpop.f32.mrb[0].mxu0
        %v639 = vpop.f32.mrb[0].mxu0
        %v640 = vadd.f32 0.0, %v639
        %v641 = vpop.f32.mrb[0].mxu0
        %642 = vdwg.mxu0
        %v643 = vsel %vm399, %v637, -inf
        %644 = vmax.xlane.f32.xlu0 %v643
        %v645 = vpop.xlane.xlu0 %644
        %v646 = vsel %vm399, %v640, -inf
        %647 = vmax.xlane.f32.xlu0 %v646
        %v648 = vpop.xlane.xlu0 %647
        %v649 = vsub.f32 %v637, %v645
        %v650 = vsub.f32 %v640, %v648
        %v651 = vmul.f32 %v649, 1.442695
        %v652 = vpow.pop %v651
        %v653 = vmul.f32 %v650, 1.442695
        %v654 = vpow.pop %v653
        %v655 = vsel %vm399, %v652, 0.0
        %656 = vadd.xlane.f32.xlu0 %v655
        %v657 = vpop.xlane.xlu0 %656
        %v658 = vsel %vm399, %v654, 0.0
        %659 = vadd.xlane.f32.xlu0 %v658
        %v660 = vpop.xlane.xlu0 %659
        %v661 = vrcp.pop %v657
        %v662 = vmul.f32 %v652, %v661
        %v663 = vrcp.pop %v660
        %v664 = vmul.f32 %v654, %v663
        %v665 = vpack.c.bf16 %v664, %v662
        %666 = vrot.lane.b32.xlu0 %v347, 48
        %v667 = vpop.permute.xlu0 %666
        %v670 = vsel %vm399, %v665, 0
        %672 = vmatprep.subr.bf16.mxu0 0
        %673 = vmatpush1.bf16.msra.mxu0 %v667
        %674 = vmatprep.subr.bf16.mxu0 0
        %675 = vmatpush1.bf16.msra.mxu0 0
        %676 = vmatprep.subr.bf16.mxu0 0
        %677 = vmatpush1.bf16.msra.mxu0 0
        %678 = vmatprep.subr.bf16.mxu0 0
        %679 = vmatpush1.bf16.msra.mxu0 0
        %680 = vmatprep.subr.bf16.mxu0 0
        %681 = vmatpush1.bf16.msra.mxu0 0
        %682 = vmatprep.subr.bf16.mxu0 0
        %683 = vmatpush1.bf16.msra.mxu0 0
        %684 = vmatprep.subr.bf16.mxu0 0
        %685 = vmatpush1.bf16.msra.mxu0 0
        %686 = vmatprep.subr.bf16.mxu0 0
        %687 = vmatpush1.bf16.msra.mxu0 0
        %688 = vmatprep.subr.bf16.mxu0 0
        %689 = vmatpush1.bf16.msra.mxu0 0
        %690 = vmatprep.subr.bf16.mxu0 0
        %691 = vmatpush1.bf16.msra.mxu0 0
        %692 = vmatprep.subr.bf16.mxu0 0
        %693 = vmatpush1.bf16.msra.mxu0 0
        %694 = vmatprep.subr.bf16.mxu0 0
        %695 = vmatpush1.bf16.msra.mxu0 0
        %696 = vmatprep.subr.bf16.mxu0 0
        %697 = vmatpush1.bf16.msra.mxu0 0
        %698 = vmatprep.subr.bf16.mxu0 0
        %699 = vmatpush1.bf16.msra.mxu0 0
        %700 = vmatprep.subr.bf16.mxu0 0
        %701 = vmatpush1.bf16.msra.mxu0 0
        %702 = vmatprep.subr.bf16.mxu0 0
        %703 = vmatpush1.bf16.msra.mxu0 0
        %704 = vmatprep.mubr.bf16.mxu0 0
        %705 = vmatmul.mubr.bf16.gmra.mrb[0].mxu0 %v670
        %v706 = vpop.f32.mrb[0].mxu0
        %v707 = vadd.f32 0.0, %v706
        %v708 = vpop.f32.mrb[0].mxu0
        %v709 = vpop.f32.mrb[0].mxu0
        %v710 = vadd.f32 0.0, %v709
        %v711 = vpop.f32.mrb[0].mxu0
        %712 = vdwg.mxu0
        %713 = vrot.lane.b32.xlu0 %v346, 104
        %v714 = vpop.permute.xlu0 %713
        %715 = vrot.lane.b32.xlu0 %v347, 72
        %v716 = vpop.permute.xlu0 %715
        %v718 = vsel %vm351, %v714, 0
        %v721 = vsel %vm351, %v716, 0
        %723 = vmatprep.subr.bf16.mxu0 0
        %724 = vmatpush1.bf16.xpose.msra.mxu0 %v721
        %725 = vmatprep.subr.bf16.mxu0 0
        %726 = vmatpush1.bf16.xpose.msra.mxu0 0
        %727 = vmatprep.subr.bf16.mxu0 0
        %728 = vmatpush1.bf16.xpose.msra.mxu0 0
        %729 = vmatprep.subr.bf16.mxu0 0
        %730 = vmatpush1.bf16.xpose.msra.mxu0 0
        %731 = vmatprep.subr.bf16.mxu0 0
        %732 = vmatpush1.bf16.xpose.msra.mxu0 0
        %733 = vmatprep.subr.bf16.mxu0 0
        %734 = vmatpush1.bf16.xpose.msra.mxu0 0
        %735 = vmatprep.subr.bf16.mxu0 0
        %736 = vmatpush1.bf16.xpose.msra.mxu0 0
        %737 = vmatprep.subr.bf16.mxu0 0
        %738 = vmatpush1.bf16.xpose.msra.mxu0 0
        %739 = vmatprep.subr.bf16.mxu0 0
        %740 = vmatpush1.bf16.xpose.msra.mxu0 0
        %741 = vmatprep.subr.bf16.mxu0 0
        %742 = vmatpush1.bf16.xpose.msra.mxu0 0
        %743 = vmatprep.subr.bf16.mxu0 0
        %744 = vmatpush1.bf16.xpose.msra.mxu0 0
        %745 = vmatprep.subr.bf16.mxu0 0
        %746 = vmatpush1.bf16.xpose.msra.mxu0 0
        %747 = vmatprep.subr.bf16.mxu0 0
        %748 = vmatpush1.bf16.xpose.msra.mxu0 0
        %749 = vmatprep.subr.bf16.mxu0 0
        %750 = vmatpush1.bf16.xpose.msra.mxu0 0
        %751 = vmatprep.subr.bf16.mxu0 0
        %752 = vmatpush1.bf16.xpose.msra.mxu0 0
        %753 = vmatprep.subr.bf16.mxu0 0
        %754 = vmatpush1.bf16.xpose.msra.mxu0 0
        %755 = vmatprep.mubr.bf16.mxu0 0
        %756 = vmatmul.mubr.bf16.gmra.mrb[0].mxu0 %v718
        %v757 = vpop.f32.mrb[0].mxu0
        %v758 = vadd.f32 0.0, %v757
        %v759 = vpop.f32.mrb[0].mxu0
        %v760 = vpop.f32.mrb[0].mxu0
        %v761 = vadd.f32 0.0, %v760
        %v762 = vpop.f32.mrb[0].mxu0
        %763 = vdwg.mxu0
        %v764 = vsel %vm399, %v758, -inf
        %765 = vmax.xlane.f32.xlu0 %v764
        %v766 = vpop.xlane.xlu0 %765
        %v767 = vsel %vm399, %v761, -inf
        %768 = vmax.xlane.f32.xlu0 %v767
        %v769 = vpop.xlane.xlu0 %768
        %v770 = vsub.f32 %v758, %v766
        %v771 = vsub.f32 %v761, %v769
        %v772 = vmul.f32 %v770, 1.442695
        %v773 = vpow.pop %v772
        %v774 = vmul.f32 %v771, 1.442695
        %v775 = vpow.pop %v774
        %v776 = vsel %vm399, %v773, 0.0
        %777 = vadd.xlane.f32.xlu0 %v776
        %v778 = vpop.xlane.xlu0 %777
        %v779 = vsel %vm399, %v775, 0.0
        %780 = vadd.xlane.f32.xlu0 %v779
        %v781 = vpop.xlane.xlu0 %780
        %v782 = vrcp.pop %v778
        %v783 = vmul.f32 %v773, %v782
        %v784 = vrcp.pop %v781
        %v785 = vmul.f32 %v775, %v784
        %v786 = vpack.c.bf16 %v785, %v783
        %787 = vrot.lane.b32.xlu0 %v347, 40
        %v788 = vpop.permute.xlu0 %787
        %v791 = vsel %vm399, %v786, 0
        %793 = vmatprep.subr.bf16.mxu0 0
        %794 = vmatpush1.bf16.msra.mxu0 %v788
        %795 = vmatprep.subr.bf16.mxu0 0
        %796 = vmatpush1.bf16.msra.mxu0 0
        %797 = vmatprep.subr.bf16.mxu0 0
        %798 = vmatpush1.bf16.msra.mxu0 0
        %799 = vmatprep.subr.bf16.mxu0 0
        %800 = vmatpush1.bf16.msra.mxu0 0
        %801 = vmatprep.subr.bf16.mxu0 0
        %802 = vmatpush1.bf16.msra.mxu0 0
        %803 = vmatprep.subr.bf16.mxu0 0
        %804 = vmatpush1.bf16.msra.mxu0 0
        %805 = vmatprep.subr.bf16.mxu0 0
        %806 = vmatpush1.bf16.msra.mxu0 0
        %807 = vmatprep.subr.bf16.mxu0 0
        %808 = vmatpush1.bf16.msra.mxu0 0
        %809 = vmatprep.subr.bf16.mxu0 0
        %810 = vmatpush1.bf16.msra.mxu0 0
        %811 = vmatprep.subr.bf16.mxu0 0
        %812 = vmatpush1.bf16.msra.mxu0 0
        %813 = vmatprep.subr.bf16.mxu0 0
        %814 = vmatpush1.bf16.msra.mxu0 0
        %815 = vmatprep.subr.bf16.mxu0 0
        %816 = vmatpush1.bf16.msra.mxu0 0
        %817 = vmatprep.subr.bf16.mxu0 0
        %818 = vmatpush1.bf16.msra.mxu0 0
        %819 = vmatprep.subr.bf16.mxu0 0
        %820 = vmatpush1.bf16.msra.mxu0 0
        %821 = vmatprep.subr.bf16.mxu0 0
        %822 = vmatpush1.bf16.msra.mxu0 0
        %823 = vmatprep.subr.bf16.mxu0 0
        %824 = vmatpush1.bf16.msra.mxu0 0
        %825 = vmatprep.mubr.bf16.mxu0 0
        %826 = vmatmul.mubr.bf16.gmra.mrb[0].mxu0 %v791
        %v827 = vpop.f32.mrb[0].mxu0
        %v828 = vadd.f32 0.0, %v827
        %v829 = vpop.f32.mrb[0].mxu0
        %v830 = vpop.f32.mrb[0].mxu0
        %v831 = vadd.f32 0.0, %v830
        %v832 = vpop.f32.mrb[0].mxu0
        %833 = vdwg.mxu0
        %836 = vrot.lane.b32.xlu0 %v586, 8
        %v837 = vpop.permute.xlu0 %836
        %838 = vrot.lane.b32.xlu0 %v589, 8
        %v839 = vpop.permute.xlu0 %838
        %844 = vrot.lane.b32.xlu0 %v707, 16
        %v845 = vpop.permute.xlu0 %844
        %846 = vrot.lane.b32.xlu0 %v710, 16
        %v847 = vpop.permute.xlu0 %846
        %852 = vrot.lane.b32.xlu0 %v828, 24
        %v853 = vpop.permute.xlu0 %852
        %854 = vrot.lane.b32.xlu0 %v831, 24
        %v855 = vpop.permute.xlu0 %854
        %v858 = vsel %vm351, %v464, %v837
        %v859 = vsel %vm351, %v467, %v839
        %v860 = vsel %vm399, %v858, %v845
        %v861 = vsel %vm399, %v859, %v847
        %vm862 = vcmask 195584
        %v863 = vsel %vm862, %v860, %v853
        %v864 = vsel %vm862, %v861, %v855
        %v865 = vpack.c.bf16 %v864, %v863
        %v866 = vld [vmem:[#allocation7] sm:$0xf]
        %v867 = vld [vmem:[#allocation7 + $0x4] sm:$0xf]
        %v868 = vld [vmem:[#allocation7 + $0x8] sm:$0xf]
        %v869 = vld [vmem:[#allocation7 + $0xc] sm:$0xf]
        %v870 = vld [vmem:[%s4] sm:$0x1]
        %v872 = vlaneseq
        %v873 = vshrl.u32 %v872, 7
        %v874 = vsub.s32 0, %v873
        %v875 = vrot.slane %v870, %v874
        %v881 = vunpack.c.l.b16 %v866
        %v882 = vunpack.c.l.b16 %v867
        %v883 = vunpack.c.l.b16 %v868
        %v884 = vunpack.c.l.b16 %v869
        %v885 = vpack.c.b16 %v882, %v881
        %v886 = vpack.c.b16 %v884, %v883
        %v890 = vsel %vm299, %v865, 0
        %892 = vmatprep.subr.bf16.mxu0 0
        %893 = vmatpush1.bf16.msra.mxu0 %v885
        %894 = vmatprep.subr.bf16.mxu0 0
        %895 = vmatpush1.bf16.msra.mxu0 %v886
        %896 = vmatprep.subr.bf16.mxu0 0
        %897 = vmatpush1.bf16.msra.mxu0 0
        %898 = vmatprep.subr.bf16.mxu0 0
        %899 = vmatpush1.bf16.msra.mxu0 0
        %900 = vmatprep.subr.bf16.mxu0 0
        %901 = vmatpush1.bf16.msra.mxu0 0
        %902 = vmatprep.subr.bf16.mxu0 0
        %903 = vmatpush1.bf16.msra.mxu0 0
        %904 = vmatprep.subr.bf16.mxu0 0
        %905 = vmatpush1.bf16.msra.mxu0 0
        %906 = vmatprep.subr.bf16.mxu0 0
        %907 = vmatpush1.bf16.msra.mxu0 0
        %908 = vmatprep.subr.bf16.mxu0 0
        %909 = vmatpush1.bf16.msra.mxu0 0
        %910 = vmatprep.subr.bf16.mxu0 0
        %911 = vmatpush1.bf16.msra.mxu0 0
        %912 = vmatprep.subr.bf16.mxu0 0
        %913 = vmatpush1.bf16.msra.mxu0 0
        %914 = vmatprep.subr.bf16.mxu0 0
        %915 = vmatpush1.bf16.msra.mxu0 0
        %916 = vmatprep.subr.bf16.mxu0 0
        %917 = vmatpush1.bf16.msra.mxu0 0
        %918 = vmatprep.subr.bf16.mxu0 0
        %919 = vmatpush1.bf16.msra.mxu0 0
        %920 = vmatprep.subr.bf16.mxu0 0
        %921 = vmatpush1.bf16.msra.mxu0 0
        %922 = vmatprep.subr.bf16.mxu0 0
        %923 = vmatpush1.bf16.msra.mxu0 0
        %924 = vmatprep.mubr.bf16.mxu0 0
        %925 = vmatmul.mubr.bf16.gmra.mrb[0].mxu0 %v890
        %v926 = vpop.f32.mrb[0].mxu0
        %v927 = vadd.f32 %v875, %v926
        %v928 = vpop.f32.mrb[0].mxu0
        %v929 = vpop.f32.mrb[0].mxu0
        %v930 = vadd.f32 %v875, %v929
        %v931 = vpop.f32.mrb[0].mxu0
        %932 = vdwg.mxu0
        %v933 = vadd.f32 %v273, %v927
        %v934 = vadd.f32 %v274, %v930
        %935 = vst.msk [vmem:[%s271] sm:$0xff] %vm299, %v933
        %936 = vst.msk [vmem:[%s271 + $0x8] sm:$0xff] %vm299, %v934
        %s937 = sand.u32 %s141, 1
        %s938 = scalar_lea.sflag [#allocation4], %s937
        %s939 = sand.u32 %s141, 1
        %s940 = smul.addr %s939, 16
        %s941 = scalar_lea.vmem [#allocation8], %s940
        // Predicated region
        $region53: #{tpu_custom_call.1} parent=39 // pred_check
          %p942 = pneg %p151
        $region54: #{tpu_custom_call.1} parent=39 // pred_check_branch
          %944 = sbr.rel (%p942) target = $region56
        $region55: #{tpu_custom_call.1} parent=39 // pred_region
          %s946 = ssub.s32 256, 256
          %947 = vsyncadd %s938, %s946
          %s948 = smul.addr %s23, 2
          %s949 = smul.addr %s948, 128
          %s950 = scalar_lea.hbm %s5, %s949
          %s951 = sshll.u32 %s941, 4
          %s952 = int_to_ptr.vmem [resolvable:$true] %s951
          %957 = dma.vmem_to_hbm [thread:$0]  %s952, 256, %s950, %s938, 128, 128, 8
        $region56: #{tpu_custom_call.1} parent=39 // pred_fallthru
          _
      $region40: #{tpu_custom_call.1} parent=5 // pred_fallthru
        _
      %p958 = scmp.le.s32.totalorder 2, %s18
      // Predicated region
      $region57: #{tpu_custom_call.1} parent=5 // pred_check
        %p959 = pneg %p958
      $region58: #{tpu_custom_call.1} parent=5 // pred_check_branch
        %961 = sbr.rel (%p959) target = $region60
      $region59: #{tpu_custom_call.1} parent=5 // pred_region
        %s962 = ssub.s32 %s18, 2
        // Predicated region
        $region61: #{tpu_custom_call.1} parent=59 // pred_check
          %p963 = pneg %p157
        $region62: #{tpu_custom_call.1} parent=59 // pred_check_branch
          %965 = sbr.rel (%p963) target = $region64
        $region63: #{tpu_custom_call.1} parent=59 // pred_region
          %s966 = sand.u32 %s142, 1
          %s967 = scalar_lea.sflag [#allocation4], %s966
          %s968 = sand.u32 %s142, 1
          %s969 = smul.addr %s968, 16
          %s970 = scalar_lea.vmem [#allocation8], %s969
          %971 = dma.done %s967, 256
        $region64: #{tpu_custom_call.1} parent=59 // pred_fallthru
          _
      $region60: #{tpu_custom_call.1} parent=5 // pred_fallthru
        _
    $region6: #{tpu_custom_call.1} parent=1 // loop_footer
      %s22 = sadd.s32 1, %s18
    $region7: #{tpu_custom_call.1} parent=1 // loop_footer_branch
      %17 = sbr.rel target = $region3
    $region8: #{tpu_custom_call.1} parent=1 // loop_exit
      _
    %972 = vsyncpa [#allocation3], 1
    %s973 = scalar_lea.sflag [#allocation3], 1
    %974 = vsyncpa %s973, 1
    %975 = vsyncpa [#allocation6], 1
    %976 = vsyncpa [#allocation4], 1
    %s977 = scalar_lea.sflag [#allocation4], 1
    %978 = vsyncpa %s977, 1

</llo_original>
